<compile_context>
chip_gen: v6e
topology: v6e:2x2x1
jax: 0.10.0
libtpu: 0.0.40
codegen_flags: <defaults>
</compile_context>

<pallas_src>
import jax
import jax.numpy as jnp
from jax.experimental import pallas as pl
from jax.experimental.pallas import tpu as pltpu


def _round_up(v, m):
    return (v + m - 1) // m * m


def _fc_kernel(x_ref, w_ref, b_ref, o_ref):
    """One K-tile of  y = x @ W^T + b ; o_ref is the resident f32 accumulator."""
    k = pl.program_id(0)

    @pl.when(k == 0)
    def _():
        # Initialize the resident output block with the bias.
        o_ref[...] = jnp.broadcast_to(b_ref[...], o_ref.shape)

    # Cast only the tiny (B-row) activation tile to the weight dtype so the MXU
    # runs a homogeneous (bf16 x bf16 -> f32) contraction over the K lane axis.
    x_tile = x_ref[...].astype(w_ref.dtype)
    o_ref[...] += jax.lax.dot_general(
        x_tile,
        w_ref[...],
        dimension_numbers=(((1,), (1,)), ((), ())),   # contract K (last axis of both)
        preferred_element_type=jnp.float32,
    )


def fc_pallas(x_flat, w, b, *, tk=None, tile_budget_bytes=24 * 1024 * 1024):
    """y = x_flat @ w.T + b.

    x_flat : (B, K)  flattened activations (any float dtype; cast in-kernel)
    w      : (N, K)  PyTorch-native nn.Linear weight layout (bf16 recommended)
    b      : (N,) or (1, N) bias
    returns (B, N) float32
    """
    B, K = x_flat.shape
    N, Kw = w.shape
    assert Kw == K, "weight inner dim must match flattened features"
    b = jnp.asarray(b, jnp.float32).reshape(1, N)

    x_it = jnp.dtype(x_flat.dtype).itemsize
    w_it = jnp.dtype(w.dtype).itemsize
    # Sublane-padded row counts once the (rows, tk) tiles land in VMEM.
    x_rows = _round_up(B, 8 * (4 // x_it))
    w_rows = _round_up(N, 8 * (4 // w_it))

    k128 = _round_up(K, 128)
    bytes_per_k = 2 * (x_rows * x_it + w_rows * w_it)   # double-buffered x + w
    if tk is None:
        # Largest lane-aligned K tile fitting the budget, then an even split of K
        # so little/no zero padding is streamed.
        max_tk = max(128, (tile_budget_bytes // bytes_per_k) // 128 * 128)
        n_k = pl.cdiv(k128, max_tk)
        tk = _round_up(pl.cdiv(k128, n_k), 128)
    else:
        tk = min(_round_up(tk, 128), k128)
        n_k = pl.cdiv(k128, tk)

    kp = tk * n_k
    if kp != K:  # zero-pad K: zeros are inert in the dot product
        x_flat = jnp.pad(x_flat, ((0, 0), (0, kp - K)))
        w = jnp.pad(w, ((0, 0), (0, kp - K)))

    # Actual VMEM need: double-buffered input tiles + resident output + bias.
    need = (bytes_per_k * tk
            + _round_up(B, 8) * _round_up(N, 128) * 4
            + 2 * 8 * _round_up(N, 128) * 4)
    vmem_limit = int(max(need * 5 // 4, 16 * 1024 * 1024))

    cost = pl.CostEstimate(
        flops=2 * B * kp * N,
        transcendentals=0,
        bytes_accessed=B * kp * x_it + N * kp * w_it + B * N * 4 + N * 4,
    )

    return pl.pallas_call(
        _fc_kernel,
        out_shape=jax.ShapeDtypeStruct((B, N), jnp.float32),
        grid_spec=pltpu.PrefetchScalarGridSpec(
            num_scalar_prefetch=0,
            grid=(n_k,),
            in_specs=[
                pl.BlockSpec((B, tk), lambda k: (0, k)),   # activations, lane-dense in K
                pl.BlockSpec((N, tk), lambda k: (0, k)),   # weight (N, K), lane-dense in K
                pl.BlockSpec((1, N), lambda k: (0, 0)),    # bias (VMEM-resident)
            ],
            out_specs=pl.BlockSpec((B, N), lambda k: (0, 0)),  # resident accumulator
        ),
        compiler_params=pltpu.CompilerParams(
            dimension_semantics=("arbitrary",),   # K is a reduction axis
            vmem_limit_bytes=vmem_limit,
        ),
        cost_estimate=cost,
    )(x_flat, w, b)


# ----------------------------------------------------------------------------
# Full forward pass mirroring CustomModel.forward (eval mode)
# ----------------------------------------------------------------------------
def custom_model_forward(x_nchw, params, *, training=False):
    # TODO(synk): `base_model.features` is an externally injected backbone
    # (unspecified in the module); treated as identity here.
    feats = x_nchw

    # TODO(synk): nn.Dropout is the identity in eval mode; train-mode masking
    # (pltpu.prng_random_bits) is not implemented here.
    del training

    B = feats.shape[0]
    # == torch .view(B, -1) for row-major NCHW; no dtype cast here — the kernel
    # casts the small activation tile on-chip (saves an HBM round trip).
    x_flat = feats.reshape(B, -1)
    return fc_pallas(x_flat, params["w"], params["b"])


if __name__ == "__main__":
    # Small stand-in shapes for the real (B, C*H*W = 460800) -> num_classes Linear.
    B, C, H, W = 2, 4, 16, 16
    num_classes = 10
    K = C * H * W

    key = jax.random.PRNGKey(0)
    kx, kw, kb = jax.random.split(key, 3)

    x = jax.random.normal(kx, (B, C, H, W), dtype=jnp.float32)
    # nn.Linear(K, num_classes): weight (num_classes, K), bias (num_classes,)
    w = jax.random.normal(kw, (num_classes, K), dtype=jnp.float32) * 0.02
    b = jax.random.normal(kb, (num_classes,), dtype=jnp.float32) * 0.02

    params = {
        "w": w.astype(jnp.bfloat16),                       # PyTorch-native (N, K), bf16
        "b": b.reshape(1, num_classes).astype(jnp.float32),
    }

    y = custom_model_forward(x, params)
    y = jax.block_until_ready(y)
    assert y.shape == (B, num_classes)

    # Reference with the same in-kernel bf16 rounding of x and w, f32 accumulation.
    x_bf = x.reshape(B, -1).astype(jnp.bfloat16).astype(jnp.float32)
    w_bf = params["w"].astype(jnp.float32)
    y_ref = jnp.dot(x_bf, w_bf.T, precision=jax.lax.Precision.HIGHEST) + b
    assert jnp.allclose(y, y_ref, atol=2e-3, rtol=2e-3), float(jnp.max(jnp.abs(y - y_ref)))

    print("KERNEL_OK")
</pallas_src>

<mosaic_0001>
module attributes {stable_mosaic.version = 11 : i64} {
  func.func @_fc_kernel(%arg0: i32, %arg1: memref<2x1024xf32, #tpu.memory_space<vmem>>, %arg2: memref<10x1024xbf16, #tpu.memory_space<vmem>>, %arg3: memref<1x10xf32, #tpu.memory_space<vmem>>, %arg4: memref<2x10xf32, #tpu.memory_space<vmem>>) attributes {dimension_semantics = [#tpu.dimension_semantics<arbitrary>], iteration_bounds = array<i64: 1>, scalar_prefetch = 0 : i64, scratch_operands = 0 : i64, tpu.core_type = #tpu.core_type<tc>, window_params = [{transform_indices = @transform_0, window_bounds = array<i64: 2, 1024>}, {transform_indices = @transform_1, window_bounds = array<i64: 10, 1024>}, {pipeline_mode = #tpu.pipeline_mode<synchronous>, transform_indices = @transform_2, window_bounds = array<i64: 1, 10>}, {pipeline_mode = #tpu.pipeline_mode<synchronous>, transform_indices = @transform_3, window_bounds = array<i64: 2, 10>}]} {
    %c0_i32 = arith.constant 0 : i32
    %0 = arith.cmpi eq, %arg0, %c0_i32 : i32
    %1 = arith.extui %0 : i1 to i32
    %c0_i32_0 = arith.constant 0 : i32
    %2 = arith.cmpi ne, %1, %c0_i32_0 : i32
    scf.if %2 {
      %c0_8 = arith.constant 0 : index
      %c0_9 = arith.constant 0 : index
      %10 = vector.load %arg3[%c0_8, %c0_9] : memref<1x10xf32, #tpu.memory_space<vmem>>, vector<1x10xf32>
      %11 = vector.shape_cast %10 : vector<1x10xf32> to vector<1x10xf32>
      %12 = vector.broadcast %11 : vector<1x10xf32> to vector<2x10xf32>
      %c0_10 = arith.constant 0 : index
      %c0_11 = arith.constant 0 : index
      %13 = vector.load %arg4[%c0_10, %c0_11] : memref<2x10xf32, #tpu.memory_space<vmem>>, vector<2x10xf32>
      tpu.vector_store %arg4[%c0_10, %c0_11], %12 {strides = array<i32>} : memref<2x10xf32, #tpu.memory_space<vmem>>, vector<2x10xf32>,
    } else {
    }
    %c0 = arith.constant 0 : index
    %c0_1 = arith.constant 0 : index
    %3 = vector.load %arg1[%c0, %c0_1] : memref<2x1024xf32, #tpu.memory_space<vmem>>, vector<2x1024xf32>
    %4 = arith.truncf %3 : vector<2x1024xf32> to vector<2x1024xbf16>
    %c0_2 = arith.constant 0 : index
    %c0_3 = arith.constant 0 : index
    %5 = vector.load %arg4[%c0_2, %c0_3] : memref<2x10xf32, #tpu.memory_space<vmem>>, vector<2x10xf32>
    %c0_4 = arith.constant 0 : index
    %c0_5 = arith.constant 0 : index
    %6 = vector.load %arg2[%c0_4, %c0_5] : memref<10x1024xbf16, #tpu.memory_space<vmem>>, vector<10x1024xbf16>
    %cst = arith.constant dense<0.000000e+00> : vector<2x10xf32>
    %7 = tpu.matmul %4, %6, %cst {dimension_numbers = #tpu.dot_dimension_numbers<[1], [1], [0], [0], [0, 0, 1, 0], [], []>} : vector<2x1024xbf16>, vector<10x1024xbf16>, vector<2x10xf32> -> vector<2x10xf32>
    %8 = arith.addf %5, %7 : vector<2x10xf32>
    %c0_6 = arith.constant 0 : index
    %c0_7 = arith.constant 0 : index
    %9 = vector.load %arg4[%c0_6, %c0_7] : memref<2x10xf32, #tpu.memory_space<vmem>>, vector<2x10xf32>
    tpu.vector_store %arg4[%c0_6, %c0_7], %8 {strides = array<i32>} : memref<2x10xf32, #tpu.memory_space<vmem>>, vector<2x10xf32>,
    return
  }
  func.func @transform_0(%arg0: i32) -> (i32, i32) {
    %c0_i32 = arith.constant 0 : i32
    %c0_i32_0 = arith.constant 0 : i32
    return %c0_i32, %arg0 : i32, i32
  }
  func.func @transform_1(%arg0: i32) -> (i32, i32) {
    %c0_i32 = arith.constant 0 : i32
    %c0_i32_0 = arith.constant 0 : i32
    return %c0_i32, %arg0 : i32, i32
  }
  func.func @transform_2(%arg0: i32) -> (i32, i32) {
    %c0_i32 = arith.constant 0 : i32
    %c0_i32_0 = arith.constant 0 : i32
    %c0_i32_1 = arith.constant 0 : i32
    return %c0_i32, %c0_i32_0 : i32, i32
  }
  func.func @transform_3(%arg0: i32) -> (i32, i32) {
    %c0_i32 = arith.constant 0 : i32
    %c0_i32_0 = arith.constant 0 : i32
    %c0_i32_1 = arith.constant 0 : i32
    return %c0_i32, %c0_i32_0 : i32, i32
  }
}

</mosaic_0001>

<llo_original>
// kernel: tpu_custom_call.1
$region0: #{tpu_custom_call.1}
  #allocation0 [shape = 'u32[]', space=smem, size = 0x4, offset = 0x4, fixed_abs, tag = 'smem constant byte address 0x4 - core index']
  #allocation1 [shape = 'u32[144,128]{1,0:T(1,128)}', space=vmem, size = 0x12000, scoped, tag = 'internal scratch']
  %s0 = inlined_call_operand.hbm [shape: f32[2,1024], index: 0, kind: input, shape index: {}]
  %s1 = inlined_call_operand.hbm [shape: bf16[10,1024], index: 1, kind: input, shape index: {}]
  %s2 = inlined_call_operand.vmem [shape: f32[1,10], index: 2, kind: input, shape index: {}]
  %s3 = inlined_call_operand.hbm [shape: f32[2,10], index: 3, kind: output, shape index: {}]
  %s4 = sld [smem:[#allocation0]]
  $region34: #{tpu_custom_call.1} parent=0
    _
  %s6 = ssub.s32 1, %s4
  %s7 = scalar_select 0, %s6, %s4
  $region1: #{tpu_custom_call.1} parent=0
    #allocation2 [shape = 'u8[8192]{0}', space=vmem, size = 0x2000, scoped, tag = 'input window, operand 0, single buffered']
    #allocation3 [shape = 's32[1]{0}', space=sflag, size = 0x4, scoped, tag = 'scoped memory for tpu_custom_call.1']
    #allocation4 [shape = 's32[1]{0}', space=sflag, size = 0x4, scoped, tag = 'scoped memory for tpu_custom_call.1']
    #allocation5 [shape = 'u8[32768]{0}', space=vmem, size = 0x8000, scoped, tag = 'input window, operand 1, single buffered']
    #allocation6 [shape = 's32[1]{0}', space=sflag, size = 0x4, scoped, tag = 'scoped memory for tpu_custom_call.1']
    #allocation7 [shape = 'u8[1024]{0}', space=vmem, size = 0x400, scoped, tag = 'output window, operand 0, single buffered']
    %8 = vsyncpa [#allocation3], 0
    %9 = vsyncpa [#allocation6], 0
    %10 = vsyncpa [#allocation4], 0
    // Predicated region
    $region2: #{tpu_custom_call.1} parent=1 // pred_check
      _
    $region3: #{tpu_custom_call.1} parent=1 // pred_check_branch
      %12 = sbr.rel (0) target = $region5
    $region4: #{tpu_custom_call.1} parent=1 // pred_region
      %s14 = ssub.s32 256, 256
      %15 = vsyncadd [#allocation3], %s14
      %s17 = sshll.u32 [#allocation2], 4
      %s18 = int_to_ptr.vmem [resolvable:$true] %s17
      %20 = dma.hbm_to_vmem [thread:$0]  %s0, 256, %s18, [#allocation3]
    $region5: #{tpu_custom_call.1} parent=1 // pred_fallthru
      _
    // Predicated region
    $region6: #{tpu_custom_call.1} parent=1 // pred_check
      _
    $region7: #{tpu_custom_call.1} parent=1 // pred_check_branch
      %22 = sbr.rel (0) target = $region9
    $region8: #{tpu_custom_call.1} parent=1 // pred_region
      %s24 = ssub.s32 1024, 1024
      %25 = vsyncadd [#allocation6], %s24
      %s26 = sshll.u32 [#allocation5], 4
      %s27 = int_to_ptr.vmem [resolvable:$true] %s26
      %32 = dma.hbm_to_vmem [thread:$0]  %s1, 1024, %s27, [#allocation6], 512, 512, 32
    $region9: #{tpu_custom_call.1} parent=1 // pred_fallthru
      _
    // Predicated region
    $region10: #{tpu_custom_call.1} parent=1 // pred_check
      _
    $region11: #{tpu_custom_call.1} parent=1 // pred_check_branch
      %34 = sbr.rel (0) target = $region13
    $region12: #{tpu_custom_call.1} parent=1 // pred_region
      _
    $region13: #{tpu_custom_call.1} parent=1 // pred_fallthru
      _
    // Predicated region
    $region14: #{tpu_custom_call.1} parent=1 // pred_check
      _
    $region15: #{tpu_custom_call.1} parent=1 // pred_check_branch
      %36 = sbr.rel (0) target = $region17
    $region16: #{tpu_custom_call.1} parent=1 // pred_region
      %37 = dma.done [#allocation3], 256
    $region17: #{tpu_custom_call.1} parent=1 // pred_fallthru
      _
    // Predicated region
    $region18: #{tpu_custom_call.1} parent=1 // pred_check
      _
    $region19: #{tpu_custom_call.1} parent=1 // pred_check_branch
      %39 = sbr.rel (0) target = $region21
    $region20: #{tpu_custom_call.1} parent=1 // pred_region
      %40 = dma.done [#allocation6], 1024
    $region21: #{tpu_custom_call.1} parent=1 // pred_fallthru
      _
    %p42 = scmp.eq.s32.totalorder 0, 0
    // Predicated region
    $region22: #{tpu_custom_call.1} parent=1 // pred_check
      %p43 = pneg %p42
    $region23: #{tpu_custom_call.1} parent=1 // pred_check_branch
      %45 = sbr.rel (%p43) target = $region25
    $region24: #{tpu_custom_call.1} parent=1 // pred_region
      %v46 = vld [vmem:[%s2] sm:$0x1]
      %v48 = vlaneseq
      %v49 = vshrl.u32 %v48, 7
      %v50 = vsub.s32 0, %v49
      %v51 = vrot.slane %v46, %v50
      %vm53 = vcmask 74752
      %54 = vst.msk [vmem:[#allocation7] sm:$0x3] %vm53, %v51
    $region25: #{tpu_custom_call.1} parent=1 // pred_fallthru
      _
    %v55 = vld [vmem:[#allocation2] sm:$0xff]
    %v56 = vld [vmem:[#allocation2 + $0x8] sm:$0xff]
    %v59 = vcombine.high %v55, %v55
    %v61 = vunpack.c.l.s4 1983009808
    %v62 = vunpack.c.0.s8 %v61
    %v63 = vlaneseq
    %v64 = vshrl.u32 %v63, 7
    %v65 = vsub.s32 %v62, %v64
    %v66 = vrot.slane %v55, %v65
    %v68 = vunpack.c.l.s4 1983009808
    %v69 = vunpack.c.0.s8 %v68
    %v70 = vlaneseq
    %v71 = vshrl.u32 %v70, 7
    %v72 = vsub.s32 %v69, %v71
    %v73 = vrot.slane %v59, %v72
    %v74 = vcombine.high %v66, %v66
    %v75 = vcombine.high %v73, %v73
    %v76 = vcombine.high %v56, %v56
    %v78 = vunpack.c.l.s4 1983009808
    %v79 = vunpack.c.0.s8 %v78
    %v80 = vlaneseq
    %v81 = vshrl.u32 %v80, 7
    %v82 = vsub.s32 %v79, %v81
    %v83 = vrot.slane %v56, %v82
    %v85 = vunpack.c.l.s4 1983009808
    %v86 = vunpack.c.0.s8 %v85
    %v87 = vlaneseq
    %v88 = vshrl.u32 %v87, 7
    %v89 = vsub.s32 %v86, %v88
    %v90 = vrot.slane %v76, %v89
    %v91 = vcombine.high %v83, %v83
    %v92 = vcombine.high %v90, %v90
    %v101 = vpack.c.bf16 %v66, %v66
    %v102 = vpack.c.bf16 %v74, %v74
    %v103 = vpack.c.bf16 %v73, %v73
    %v104 = vpack.c.bf16 %v75, %v75
    %v105 = vpack.c.bf16 %v83, %v83
    %v106 = vpack.c.bf16 %v91, %v91
    %v107 = vpack.c.bf16 %v90, %v90
    %v108 = vpack.c.bf16 %v92, %v92
    %v109 = vld [vmem:[#allocation7] sm:$0x3]
    %v110 = vld [vmem:[#allocation5] sm:$0xff]
    %v111 = vld [vmem:[#allocation5 + $0x8] sm:$0xff]
    %v112 = vld [vmem:[#allocation5 + $0x10] sm:$0xff]
    %v113 = vld [vmem:[#allocation5 + $0x18] sm:$0xff]
    %v114 = vld [vmem:[#allocation5 + $0x20] sm:$0x11]
    %v115 = vld [vmem:[#allocation5 + $0x28] sm:$0x11]
    %v116 = vld [vmem:[#allocation5 + $0x30] sm:$0x11]
    %v117 = vld [vmem:[#allocation5 + $0x38] sm:$0x11]
    %v126 = vunpack.c.l.b16 %v110
    %v127 = vunpack.c.h.b16 %v110
    %v128 = vunpack.c.l.b16 %v111
    %v129 = vunpack.c.h.b16 %v111
    %v130 = vunpack.c.l.b16 %v112
    %v131 = vunpack.c.h.b16 %v112
    %v132 = vunpack.c.l.b16 %v113
    %v133 = vunpack.c.h.b16 %v113
    %v134 = vunpack.c.l.b16 %v114
    %v135 = vunpack.c.h.b16 %v114
    %v136 = vunpack.c.l.b16 %v115
    %v137 = vunpack.c.h.b16 %v115
    %v138 = vunpack.c.l.b16 %v116
    %v139 = vunpack.c.h.b16 %v116
    %v140 = vunpack.c.l.b16 %v117
    %v141 = vunpack.c.h.b16 %v117
    %v142 = vpack.c.b16 %v134, %v126
    %v143 = vpack.c.b16 %v135, %v127
    %v144 = vpack.c.b16 %v136, %v128
    %v145 = vpack.c.b16 %v137, %v129
    %v146 = vpack.c.b16 %v138, %v130
    %v147 = vpack.c.b16 %v139, %v131
    %v148 = vpack.c.b16 %v140, %v132
    %v149 = vpack.c.b16 %v141, %v133
    %158 = vmatprep.subr.bf16.mxu0 0
    %159 = vmatpush1.bf16.xpose.msra.mxu0 0
    %160 = vmatprep.subr.bf16.mxu0 0
    %161 = vmatpush1.bf16.xpose.msra.mxu0 0
    %162 = vmatprep.subr.bf16.mxu0 0
    %163 = vmatpush1.bf16.xpose.msra.mxu0 0
    %164 = vmatprep.subr.bf16.mxu0 0
    %165 = vmatpush1.bf16.xpose.msra.mxu0 0
    %166 = vmatprep.subr.bf16.mxu0 0
    %167 = vmatpush1.bf16.xpose.msra.mxu0 0
    %168 = vmatprep.subr.bf16.mxu0 0
    %169 = vmatpush1.bf16.xpose.msra.mxu0 0
    %170 = vmatprep.subr.bf16.mxu0 0
    %171 = vmatpush1.bf16.xpose.msra.mxu0 0
    %172 = vmatprep.subr.bf16.mxu0 %v143
    %173 = vmatpush1.bf16.xpose.msra.mxu0 %v142
    %174 = vmatprep.subr.bf16.mxu0 0
    %175 = vmatpush2.bf16.xpose.msra.mxu0 0
    %176 = vmatprep.subr.bf16.mxu0 0
    %177 = vmatpush2.bf16.xpose.msra.mxu0 0
    %178 = vmatprep.subr.bf16.mxu0 0
    %179 = vmatpush2.bf16.xpose.msra.mxu0 0
    %180 = vmatprep.subr.bf16.mxu0 0
    %181 = vmatpush2.bf16.xpose.msra.mxu0 0
    %182 = vmatprep.subr.bf16.mxu0 0
    %183 = vmatpush2.bf16.xpose.msra.mxu0 0
    %184 = vmatprep.subr.bf16.mxu0 0
    %185 = vmatpush2.bf16.xpose.msra.mxu0 0
    %186 = vmatprep.subr.bf16.mxu0 0
    %187 = vmatpush2.bf16.xpose.msra.mxu0 0
    %188 = vmatprep.subr.bf16.mxu0 0
    %189 = vmatpush2.bf16.xpose.msra.mxu0 0
    %190 = vmatprep.mubr.bf16.mxu0 %v102
    %191 = vmatmul.mubr.bf16.gmra.mxu0 %v101
    %v192 = vpop.f32.mrf.mxu0
    %v193 = vadd.f32 0.0, %v192
    %v194 = vpop.f32.mrf.mxu0
    %v195 = vpop.f32.mrf.mxu0
    %v196 = vpop.f32.mrf.mxu0
    %197 = vdwg.mxu0
    %198 = vmatprep.subr.bf16.mxu0 0
    %199 = vmatpush1.bf16.xpose.msra.mxu0 0
    %200 = vmatprep.subr.bf16.mxu0 0
    %201 = vmatpush1.bf16.xpose.msra.mxu0 0
    %202 = vmatprep.subr.bf16.mxu0 0
    %203 = vmatpush1.bf16.xpose.msra.mxu0 0
    %204 = vmatprep.subr.bf16.mxu0 0
    %205 = vmatpush1.bf16.xpose.msra.mxu0 0
    %206 = vmatprep.subr.bf16.mxu0 0
    %207 = vmatpush1.bf16.xpose.msra.mxu0 0
    %208 = vmatprep.subr.bf16.mxu0 0
    %209 = vmatpush1.bf16.xpose.msra.mxu0 0
    %210 = vmatprep.subr.bf16.mxu0 0
    %211 = vmatpush1.bf16.xpose.msra.mxu0 0
    %212 = vmatprep.subr.bf16.mxu0 %v145
    %213 = vmatpush1.bf16.xpose.msra.mxu0 %v144
    %214 = vmatprep.subr.bf16.mxu0 0
    %215 = vmatpush2.bf16.xpose.msra.mxu0 0
    %216 = vmatprep.subr.bf16.mxu0 0
    %217 = vmatpush2.bf16.xpose.msra.mxu0 0
    %218 = vmatprep.subr.bf16.mxu0 0
    %219 = vmatpush2.bf16.xpose.msra.mxu0 0
    %220 = vmatprep.subr.bf16.mxu0 0
    %221 = vmatpush2.bf16.xpose.msra.mxu0 0
    %222 = vmatprep.subr.bf16.mxu0 0
    %223 = vmatpush2.bf16.xpose.msra.mxu0 0
    %224 = vmatprep.subr.bf16.mxu0 0
    %225 = vmatpush2.bf16.xpose.msra.mxu0 0
    %226 = vmatprep.subr.bf16.mxu0 0
    %227 = vmatpush2.bf16.xpose.msra.mxu0 0
    %228 = vmatprep.subr.bf16.mxu0 0
    %229 = vmatpush2.bf16.xpose.msra.mxu0 0
    %230 = vmatprep.mubr.bf16.mxu0 %v104
    %231 = vmatmul.mubr.bf16.gmra.mxu0 %v103
    %v232 = vpop.f32.mrf.mxu0
    %v233 = vadd.f32 %v193, %v232
    %v234 = vpop.f32.mrf.mxu0
    %v235 = vpop.f32.mrf.mxu0
    %v236 = vpop.f32.mrf.mxu0
    %237 = vdwg.mxu0
    %238 = vmatprep.subr.bf16.mxu0 0
    %239 = vmatpush1.bf16.xpose.msra.mxu0 0
    %240 = vmatprep.subr.bf16.mxu0 0
    %241 = vmatpush1.bf16.xpose.msra.mxu0 0
    %242 = vmatprep.subr.bf16.mxu0 0
    %243 = vmatpush1.bf16.xpose.msra.mxu0 0
    %244 = vmatprep.subr.bf16.mxu0 0
    %245 = vmatpush1.bf16.xpose.msra.mxu0 0
    %246 = vmatprep.subr.bf16.mxu0 0
    %247 = vmatpush1.bf16.xpose.msra.mxu0 0
    %248 = vmatprep.subr.bf16.mxu0 0
    %249 = vmatpush1.bf16.xpose.msra.mxu0 0
    %250 = vmatprep.subr.bf16.mxu0 0
    %251 = vmatpush1.bf16.xpose.msra.mxu0 0
    %252 = vmatprep.subr.bf16.mxu0 %v147
    %253 = vmatpush1.bf16.xpose.msra.mxu0 %v146
    %254 = vmatprep.subr.bf16.mxu0 0
    %255 = vmatpush2.bf16.xpose.msra.mxu0 0
    %256 = vmatprep.subr.bf16.mxu0 0
    %257 = vmatpush2.bf16.xpose.msra.mxu0 0
    %258 = vmatprep.subr.bf16.mxu0 0
    %259 = vmatpush2.bf16.xpose.msra.mxu0 0
    %260 = vmatprep.subr.bf16.mxu0 0
    %261 = vmatpush2.bf16.xpose.msra.mxu0 0
    %262 = vmatprep.subr.bf16.mxu0 0
    %263 = vmatpush2.bf16.xpose.msra.mxu0 0
    %264 = vmatprep.subr.bf16.mxu0 0
    %265 = vmatpush2.bf16.xpose.msra.mxu0 0
    %266 = vmatprep.subr.bf16.mxu0 0
    %267 = vmatpush2.bf16.xpose.msra.mxu0 0
    %268 = vmatprep.subr.bf16.mxu0 0
    %269 = vmatpush2.bf16.xpose.msra.mxu0 0
    %270 = vmatprep.mubr.bf16.mxu0 %v106
    %271 = vmatmul.mubr.bf16.gmra.mxu0 %v105
    %v272 = vpop.f32.mrf.mxu0
    %v273 = vadd.f32 %v233, %v272
    %v274 = vpop.f32.mrf.mxu0
    %v275 = vpop.f32.mrf.mxu0
    %v276 = vpop.f32.mrf.mxu0
    %277 = vdwg.mxu0
    %278 = vmatprep.subr.bf16.mxu0 0
    %279 = vmatpush1.bf16.xpose.msra.mxu0 0
    %280 = vmatprep.subr.bf16.mxu0 0
    %281 = vmatpush1.bf16.xpose.msra.mxu0 0
    %282 = vmatprep.subr.bf16.mxu0 0
    %283 = vmatpush1.bf16.xpose.msra.mxu0 0
    %284 = vmatprep.subr.bf16.mxu0 0
    %285 = vmatpush1.bf16.xpose.msra.mxu0 0
    %286 = vmatprep.subr.bf16.mxu0 0
    %287 = vmatpush1.bf16.xpose.msra.mxu0 0
    %288 = vmatprep.subr.bf16.mxu0 0
    %289 = vmatpush1.bf16.xpose.msra.mxu0 0
    %290 = vmatprep.subr.bf16.mxu0 0
    %291 = vmatpush1.bf16.xpose.msra.mxu0 0
    %292 = vmatprep.subr.bf16.mxu0 %v149
    %293 = vmatpush1.bf16.xpose.msra.mxu0 %v148
    %294 = vmatprep.subr.bf16.mxu0 0
    %295 = vmatpush2.bf16.xpose.msra.mxu0 0
    %296 = vmatprep.subr.bf16.mxu0 0
    %297 = vmatpush2.bf16.xpose.msra.mxu0 0
    %298 = vmatprep.subr.bf16.mxu0 0
    %299 = vmatpush2.bf16.xpose.msra.mxu0 0
    %300 = vmatprep.subr.bf16.mxu0 0
    %301 = vmatpush2.bf16.xpose.msra.mxu0 0
    %302 = vmatprep.subr.bf16.mxu0 0
    %303 = vmatpush2.bf16.xpose.msra.mxu0 0
    %304 = vmatprep.subr.bf16.mxu0 0
    %305 = vmatpush2.bf16.xpose.msra.mxu0 0
    %306 = vmatprep.subr.bf16.mxu0 0
    %307 = vmatpush2.bf16.xpose.msra.mxu0 0
    %308 = vmatprep.subr.bf16.mxu0 0
    %309 = vmatpush2.bf16.xpose.msra.mxu0 0
    %310 = vmatprep.mubr.bf16.mxu0 %v108
    %311 = vmatmul.mubr.bf16.gmra.mxu0 %v107
    %v312 = vpop.f32.mrf.mxu0
    %v313 = vadd.f32 %v273, %v312
    %v314 = vpop.f32.mrf.mxu0
    %v315 = vpop.f32.mrf.mxu0
    %v316 = vpop.f32.mrf.mxu0
    %317 = vdwg.mxu0
    %v318 = vadd.f32 %v109, %v313
    %vm319 = vcmask 74752
    %320 = vst.msk [vmem:[#allocation7] sm:$0x3] %vm319, %v318
    // Predicated region
    $region26: #{tpu_custom_call.1} parent=1 // pred_check
      _
    $region27: #{tpu_custom_call.1} parent=1 // pred_check_branch
      %322 = sbr.rel (0) target = $region29
    $region28: #{tpu_custom_call.1} parent=1 // pred_region
      %s324 = ssub.s32 32, 32
      %325 = vsyncadd [#allocation4], %s324
      %s327 = sshll.u32 [#allocation7], 4
      %s328 = int_to_ptr.vmem [resolvable:$true] %s327
      %330 = dma.vmem_to_hbm [thread:$0]  %s328, 32, %s3, [#allocation4]
    $region29: #{tpu_custom_call.1} parent=1 // pred_fallthru
      _
    // Predicated region
    $region30: #{tpu_custom_call.1} parent=1 // pred_check
      _
    $region31: #{tpu_custom_call.1} parent=1 // pred_check_branch
      %332 = sbr.rel (0) target = $region33
    $region32: #{tpu_custom_call.1} parent=1 // pred_region
      %333 = dma.done [#allocation4], 32
    $region33: #{tpu_custom_call.1} parent=1 // pred_fallthru
      _
    %334 = vsyncpa [#allocation3], 1
    %335 = vsyncpa [#allocation6], 1
    %336 = vsyncpa [#allocation4], 1

</llo_original>
